<compile_context>
chip_gen: v5e
topology: v5e:2x2
jax: 0.10.0
libtpu: 0.0.40
codegen_flags: <defaults>
</compile_context>

<pallas_src>
import math

import jax
import jax.numpy as jnp
from jax import lax
from jax.experimental import pallas as pl
from jax.experimental.pallas import tpu as pltpu

F32 = jnp.float32


# ---------------------------------------------------------------------------
# Pallas kernel: full GCBlock for one batch element per grid step.
# Layout inside the kernel: (C, HW) with C on sublanes, HW on the lane axis.
# ---------------------------------------------------------------------------
def _gc_block_kernel(x_ref, watt_ref, batt_ref, w12_ref, b12_ref,
                     w15_ref, b15_ref, o_ref):
    x = x_ref[0]                                                   # (C, HW)

    # attention = 1x1 conv C -> 1 on the ORIGINAL input:
    # (1, C) @ (C, HW) on the MXU -> lane-dense (1, HW).
    att = jnp.dot(watt_ref[...], x,
                  preferred_element_type=jnp.float32) + batt_ref[...]     # (1, HW)

    # Softmax over channels (F.softmax with no dim on 4-D == dim=1), with the
    # normalization deferred.  Channel max is a cheap sublane reduce; the
    # denominator goes to the idle MXU instead of the XLU.
    mx = jnp.max(x, axis=0, keepdims=True)                         # (1, HW)
    e = jnp.exp(x - mx)                                            # (C, HW) EUP
    denom = jnp.dot(jnp.ones((1, x.shape[0]), jnp.float32), e,
                    preferred_element_type=jnp.float32)            # (1, HW)
    inv = 1.0 / denom                                              # exact, HW values

    # Global pooling: c11[c] = sum_f softmax(x)[c,f] * att[f].
    # Fold the softmax normalization into the attention weights and contract
    # over the spatial axis on the MXU (NT matmul, q @ k^T pattern).
    wgt = att * inv                                                # (1, HW)
    c11 = lax.dot_general(e, wgt, (((1,), (1,)), ((), ())),
                          preferred_element_type=jnp.float32)      # (C, 1)

    # Squeeze/excite: 1x1 conv C->Cr, LayerNorm over Cr (no affine, eps=1e-5),
    # ReLU, 1x1 conv Cr->C.  All tiny column-vector matmuls on the MXU.
    c12 = jnp.dot(w12_ref[...], c11,
                  preferred_element_type=jnp.float32) + b12_ref[...]      # (Cr, 1)
    mu = jnp.mean(c12, axis=0, keepdims=True)
    var = jnp.mean(jnp.square(c12 - mu), axis=0, keepdims=True)
    r = jnp.maximum((c12 - mu) * lax.rsqrt(var + 1e-5), 0.0)       # (Cr, 1)
    c15 = jnp.dot(w15_ref[...], r,
                  preferred_element_type=jnp.float32) + b15_ref[...]      # (C, 1)

    # Residual: softmax(x) + c15 (broadcast over all spatial positions).
    # softmax is only materialized here, at the final store.
    o_ref[0] = (e * inv + c15).astype(o_ref.dtype)


def gc_block_forward(params, x_nchw):
    """GCBlock forward.  x_nchw: (N, C, H, W) float32 -> (N, C, H, W)."""
    n, c, h, w = x_nchw.shape
    hw = h * w
    cr = params["c12_w"].shape[0]

    # NCHW -> (N, C, HW): a free reshape (HW already contiguous), no transpose.
    x3 = x_nchw.astype(F32).reshape(n, c, hw)

    # Torch conv weights -> matmul-friendly 2-D slabs (kept in NCHW-native
    # orientation so no transposed activations are ever needed).
    watt = params["att_w"].reshape(1, c)          # (1, C)
    batt = params["att_b"].reshape(1, 1)          # (1, 1)
    w12 = params["c12_w"].reshape(cr, c)          # (Cr, C)
    b12 = params["c12_b"].reshape(cr, 1)          # (Cr, 1)
    w15 = params["c15_w"].reshape(c, cr)          # (C, Cr)
    b15 = params["c15_b"].reshape(c, 1)           # (C, 1)

    out3 = pl.pallas_call(
        _gc_block_kernel,
        out_shape=jax.ShapeDtypeStruct((n, c, hw), F32),
        grid=(n,),
        in_specs=[
            pl.BlockSpec((1, c, hw), lambda b: (b, 0, 0)),
            pl.BlockSpec((1, c), lambda b: (0, 0)),
            pl.BlockSpec((1, 1), lambda b: (0, 0)),
            pl.BlockSpec((cr, c), lambda b: (0, 0)),
            pl.BlockSpec((cr, 1), lambda b: (0, 0)),
            pl.BlockSpec((c, cr), lambda b: (0, 0)),
            pl.BlockSpec((c, 1), lambda b: (0, 0)),
        ],
        out_specs=pl.BlockSpec((1, c, hw), lambda b: (b, 0, 0)),
        compiler_params=pltpu.CompilerParams(
            dimension_semantics=("parallel",)),   # batch -> both TCs on v7x
    )(x3, watt, batt, w12, b12, w15, b15)

    return out3.reshape(n, c, h, w)


# ---------------------------------------------------------------------------
# Pure-JAX reference (mirrors the PyTorch forward).  Written with explicit
# broadcast-multiply + sums (no jnp.dot) so it is f32-exact regardless of the
# backend's default matmul precision.
# ---------------------------------------------------------------------------
def gc_block_reference(params, x):
    n, c, h, w = x.shape
    watt = params["att_w"].reshape(c)
    batt = params["att_b"].reshape(())
    w12 = params["c12_w"].reshape(-1, c)
    b12 = params["c12_b"]
    w15 = params["c15_w"].reshape(c, -1)
    b15 = params["c15_b"]
    att = jnp.sum(x * watt[None, :, None, None], axis=1) + batt      # (N,H,W)
    sm = jax.nn.softmax(x, axis=1)
    c11 = jnp.sum(sm * att[:, None, :, :], axis=(2, 3))              # (N,C)
    c12 = jnp.sum(c11[:, None, :] * w12[None, :, :], axis=-1) + b12  # (N,Cr)
    mu = c12.mean(-1, keepdims=True)
    var = jnp.mean(jnp.square(c12 - mu), axis=-1, keepdims=True)
    r = jnp.maximum((c12 - mu) * lax.rsqrt(var + 1e-5), 0.0)
    c15 = jnp.sum(r[:, None, :] * w15[None, :, :], axis=-1) + b15    # (N,C)
    return sm + c15[:, :, None, None]


def init_params(key, c, reduction_ratio=16):
    """PyTorch Conv2d-style (kaiming-uniform-ish) deterministic init."""
    cr = math.ceil(c / reduction_ratio)
    ks = jax.random.split(key, 6)
    b_c = 1.0 / math.sqrt(c)
    b_r = 1.0 / math.sqrt(cr)
    return {
        "att_w": jax.random.uniform(ks[0], (1, c, 1, 1), F32, -b_c, b_c),
        "att_b": jax.random.uniform(ks[1], (1,), F32, -b_c, b_c),
        "c12_w": jax.random.uniform(ks[2], (cr, c, 1, 1), F32, -b_c, b_c),
        "c12_b": jax.random.uniform(ks[3], (cr,), F32, -b_c, b_c),
        "c15_w": jax.random.uniform(ks[4], (c, cr, 1, 1), F32, -b_r, b_r),
        "c15_b": jax.random.uniform(ks[5], (c,), F32, -b_r, b_r),
    }


if __name__ == "__main__":
    key = jax.random.PRNGKey(0)
    pkey, xkey = jax.random.split(key)

    # GCBlock as instantiated in hr_cnn.py: c=128, reduction_ratio=16 (Cr=8).
    N, C, H, W = 2, 128, 16, 16
    params = init_params(pkey, C, reduction_ratio=16)
    x = jax.random.normal(xkey, (N, C, H, W), F32)

    fwd = jax.jit(gc_block_forward)
    out = jax.block_until_ready(fwd(params, x))

    assert out.shape == (N, C, H, W), out.shape
    assert bool(jnp.all(jnp.isfinite(out)))
    ref = gc_block_reference(params, x)
    err = float(jnp.max(jnp.abs(out - ref)))
    assert err < 1e-3, f"max abs err vs reference: {err}"
    print("KERNEL_OK")
</pallas_src>

<mosaic_0001>
module attributes {stable_mosaic.version = 11 : i64} {
  func.func @_gc_block_kernel(%arg0: i32, %arg1: memref<1x128x256xf32, #tpu.memory_space<vmem>>, %arg2: memref<1x128xf32, #tpu.memory_space<vmem>>, %arg3: memref<1x1xf32, #tpu.memory_space<vmem>>, %arg4: memref<8x128xf32, #tpu.memory_space<vmem>>, %arg5: memref<8x1xf32, #tpu.memory_space<vmem>>, %arg6: memref<128x8xf32, #tpu.memory_space<vmem>>, %arg7: memref<128x1xf32, #tpu.memory_space<vmem>>, %arg8: memref<1x128x256xf32, #tpu.memory_space<vmem>>) attributes {dimension_semantics = [#tpu.dimension_semantics<parallel>], iteration_bounds = array<i64: 2>, scalar_prefetch = 0 : i64, scratch_operands = 0 : i64, tpu.core_type = #tpu.core_type<tc>, window_params = [{transform_indices = @transform_0, window_bounds = array<i64: 1, 128, 256>}, {pipeline_mode = #tpu.pipeline_mode<synchronous>, transform_indices = @transform_1, window_bounds = array<i64: 1, 128>}, {pipeline_mode = #tpu.pipeline_mode<synchronous>, transform_indices = @transform_2, window_bounds = array<i64: 1, 1>}, {pipeline_mode = #tpu.pipeline_mode<synchronous>, transform_indices = @transform_3, window_bounds = array<i64: 8, 128>}, {pipeline_mode = #tpu.pipeline_mode<synchronous>, transform_indices = @transform_4, window_bounds = array<i64: 8, 1>}, {pipeline_mode = #tpu.pipeline_mode<synchronous>, transform_indices = @transform_5, window_bounds = array<i64: 128, 8>}, {pipeline_mode = #tpu.pipeline_mode<synchronous>, transform_indices = @transform_6, window_bounds = array<i64: 128, 1>}, {transform_indices = @transform_7, window_bounds = array<i64: 1, 128, 256>}]} {
    %c0 = arith.constant 0 : index
    %c0_0 = arith.constant 0 : index
    %c0_1 = arith.constant 0 : index
    %0 = vector.load %arg1[%c0, %c0_0, %c0_1] : memref<1x128x256xf32, #tpu.memory_space<vmem>>, vector<1x128x256xf32>
    %1 = vector.shape_cast %0 : vector<1x128x256xf32> to vector<128x256xf32>
    %c0_2 = arith.constant 0 : index
    %c0_3 = arith.constant 0 : index
    %2 = vector.load %arg2[%c0_2, %c0_3] : memref<1x128xf32, #tpu.memory_space<vmem>>, vector<1x128xf32>
    %cst = arith.constant dense<0.000000e+00> : vector<1x256xf32>
    %3 = tpu.matmul %2, %1, %cst {dimension_numbers = #tpu.dot_dimension_numbers<[1], [0], [0], [1], [0, 0, 1, 1], [], []>} : vector<1x128xf32>, vector<128x256xf32>, vector<1x256xf32> -> vector<1x256xf32>
    %c0_4 = arith.constant 0 : index
    %c0_5 = arith.constant 0 : index
    %4 = vector.load %arg3[%c0_4, %c0_5] : memref<1x1xf32, #tpu.memory_space<vmem>>, vector<1x1xf32>
    %5 = vector.broadcast %4 : vector<1x1xf32> to vector<1x256xf32>
    %6 = arith.addf %3, %5 : vector<1x256xf32>
    %cst_6 = arith.constant dense<0xFF800000> : vector<256xf32>
    %7 = vector.multi_reduction <maximumf>, %1, %cst_6 [0] : vector<128x256xf32> to vector<256xf32>
    %8 = vector.shape_cast %7 : vector<256xf32> to vector<1x256xf32>
    %9 = vector.broadcast %8 : vector<1x256xf32> to vector<128x256xf32>
    %10 = arith.subf %1, %9 : vector<128x256xf32>
    %11 = math.exp %10 : vector<128x256xf32>
    %cst_7 = arith.constant 1.000000e+00 : f32
    %12 = vector.broadcast %cst_7 : f32 to vector<1x128xf32>
    %cst_8 = arith.constant dense<0.000000e+00> : vector<1x256xf32>
    %13 = tpu.matmul %12, %11, %cst_8 {dimension_numbers = #tpu.dot_dimension_numbers<[1], [0], [0], [1], [0, 0, 1, 1], [], []>} : vector<1x128xf32>, vector<128x256xf32>, vector<1x256xf32> -> vector<1x256xf32>
    %cst_9 = arith.constant 1.000000e+00 : f32
    %14 = vector.broadcast %cst_9 : f32 to vector<1x256xf32>
    %15 = arith.divf %14, %13 : vector<1x256xf32>
    %16 = arith.mulf %6, %15 : vector<1x256xf32>
    %cst_10 = arith.constant dense<0.000000e+00> : vector<128x1xf32>
    %17 = tpu.matmul %11, %16, %cst_10 {dimension_numbers = #tpu.dot_dimension_numbers<[1], [1], [0], [0], [0, 0, 1, 0], [], []>} : vector<128x256xf32>, vector<1x256xf32>, vector<128x1xf32> -> vector<128x1xf32>
    %c0_11 = arith.constant 0 : index
    %c0_12 = arith.constant 0 : index
    %18 = vector.load %arg4[%c0_11, %c0_12] : memref<8x128xf32, #tpu.memory_space<vmem>>, vector<8x128xf32>
    %cst_13 = arith.constant dense<0.000000e+00> : vector<8x1xf32>
    %19 = tpu.matmul %18, %17, %cst_13 {dimension_numbers = #tpu.dot_dimension_numbers<[1], [0], [0], [1], [0, 0, 1, 1], [], []>} : vector<8x128xf32>, vector<128x1xf32>, vector<8x1xf32> -> vector<8x1xf32>
    %c0_14 = arith.constant 0 : index
    %c0_15 = arith.constant 0 : index
    %20 = vector.load %arg5[%c0_14, %c0_15] : memref<8x1xf32, #tpu.memory_space<vmem>>, vector<8x1xf32>
    %21 = arith.addf %19, %20 : vector<8x1xf32>
    %cst_16 = arith.constant dense<0.000000e+00> : vector<1xf32>
    %22 = vector.multi_reduction <add>, %21, %cst_16 [0] : vector<8x1xf32> to vector<1xf32>
    %23 = vector.shape_cast %22 : vector<1xf32> to vector<1x1xf32>
    %cst_17 = arith.constant 8.000000e+00 : f32
    %24 = vector.broadcast %cst_17 : f32 to vector<1x1xf32>
    %25 = arith.divf %23, %24 : vector<1x1xf32>
    %26 = vector.broadcast %25 : vector<1x1xf32> to vector<8x1xf32>
    %27 = arith.subf %21, %26 : vector<8x1xf32>
    %28 = arith.mulf %27, %27 : vector<8x1xf32>
    %cst_18 = arith.constant dense<0.000000e+00> : vector<1xf32>
    %29 = vector.multi_reduction <add>, %28, %cst_18 [0] : vector<8x1xf32> to vector<1xf32>
    %30 = vector.shape_cast %29 : vector<1xf32> to vector<1x1xf32>
    %cst_19 = arith.constant 8.000000e+00 : f32
    %31 = vector.broadcast %cst_19 : f32 to vector<1x1xf32>
    %32 = arith.divf %30, %31 : vector<1x1xf32>
    %33 = vector.broadcast %25 : vector<1x1xf32> to vector<8x1xf32>
    %34 = arith.subf %21, %33 : vector<8x1xf32>
    %cst_20 = arith.constant 9.99999974E-6 : f32
    %35 = vector.broadcast %cst_20 : f32 to vector<1x1xf32>
    %36 = arith.addf %32, %35 : vector<1x1xf32>
    %37 = math.rsqrt %36 : vector<1x1xf32>
    %38 = vector.broadcast %37 : vector<1x1xf32> to vector<8x1xf32>
    %39 = arith.mulf %34, %38 : vector<8x1xf32>
    %cst_21 = arith.constant 0.000000e+00 : f32
    %40 = vector.broadcast %cst_21 : f32 to vector<8x1xf32>
    %41 = arith.maximumf %39, %40 : vector<8x1xf32>
    %c0_22 = arith.constant 0 : index
    %c0_23 = arith.constant 0 : index
    %42 = vector.load %arg6[%c0_22, %c0_23] : memref<128x8xf32, #tpu.memory_space<vmem>>, vector<128x8xf32>
    %cst_24 = arith.constant dense<0.000000e+00> : vector<128x1xf32>
    %43 = tpu.matmul %42, %41, %cst_24 {dimension_numbers = #tpu.dot_dimension_numbers<[1], [0], [0], [1], [0, 0, 1, 1], [], []>} : vector<128x8xf32>, vector<8x1xf32>, vector<128x1xf32> -> vector<128x1xf32>
    %c0_25 = arith.constant 0 : index
    %c0_26 = arith.constant 0 : index
    %44 = vector.load %arg7[%c0_25, %c0_26] : memref<128x1xf32, #tpu.memory_space<vmem>>, vector<128x1xf32>
    %45 = arith.addf %43, %44 : vector<128x1xf32>
    %46 = vector.broadcast %15 : vector<1x256xf32> to vector<128x256xf32>
    %47 = arith.mulf %11, %46 : vector<128x256xf32>
    %48 = vector.broadcast %45 : vector<128x1xf32> to vector<128x256xf32>
    %49 = arith.addf %47, %48 : vector<128x256xf32>
    %c0_27 = arith.constant 0 : index
    %c0_28 = arith.constant 0 : index
    %c0_29 = arith.constant 0 : index
    %50 = vector.load %arg8[%c0_27, %c0_28, %c0_29] : memref<1x128x256xf32, #tpu.memory_space<vmem>>, vector<1x128x256xf32>
    %51 = vector.shape_cast %50 : vector<1x128x256xf32> to vector<128x256xf32>
    %52 = vector.shape_cast %49 : vector<128x256xf32> to vector<1x128x256xf32>
    tpu.vector_store %arg8[%c0_27, %c0_28, %c0_29], %52 {strides = array<i32>} : memref<1x128x256xf32, #tpu.memory_space<vmem>>, vector<1x128x256xf32>,
    return
  }
  func.func @transform_0(%arg0: i32) -> (i32, i32, i32) {
    %c0_i32 = arith.constant 0 : i32
    %c0_i32_0 = arith.constant 0 : i32
    %c0_i32_1 = arith.constant 0 : i32
    return %arg0, %c0_i32, %c0_i32_0 : i32, i32, i32
  }
  func.func @transform_1(%arg0: i32) -> (i32, i32) {
    %c0_i32 = arith.constant 0 : i32
    %c0_i32_0 = arith.constant 0 : i32
    %c0_i32_1 = arith.constant 0 : i32
    return %c0_i32, %c0_i32_0 : i32, i32
  }
  func.func @transform_2(%arg0: i32) -> (i32, i32) {
    %c0_i32 = arith.constant 0 : i32
    %c0_i32_0 = arith.constant 0 : i32
    %c0_i32_1 = arith.constant 0 : i32
    return %c0_i32, %c0_i32_0 : i32, i32
  }
  func.func @transform_3(%arg0: i32) -> (i32, i32) {
    %c0_i32 = arith.constant 0 : i32
    %c0_i32_0 = arith.constant 0 : i32
    %c0_i32_1 = arith.constant 0 : i32
    return %c0_i32, %c0_i32_0 : i32, i32
  }
  func.func @transform_4(%arg0: i32) -> (i32, i32) {
    %c0_i32 = arith.constant 0 : i32
    %c0_i32_0 = arith.constant 0 : i32
    %c0_i32_1 = arith.constant 0 : i32
    return %c0_i32, %c0_i32_0 : i32, i32
  }
  func.func @transform_5(%arg0: i32) -> (i32, i32) {
    %c0_i32 = arith.constant 0 : i32
    %c0_i32_0 = arith.constant 0 : i32
    %c0_i32_1 = arith.constant 0 : i32
    return %c0_i32, %c0_i32_0 : i32, i32
  }
  func.func @transform_6(%arg0: i32) -> (i32, i32) {
    %c0_i32 = arith.constant 0 : i32
    %c0_i32_0 = arith.constant 0 : i32
    %c0_i32_1 = arith.constant 0 : i32
    return %c0_i32, %c0_i32_0 : i32, i32
  }
  func.func @transform_7(%arg0: i32) -> (i32, i32, i32) {
    %c0_i32 = arith.constant 0 : i32
    %c0_i32_0 = arith.constant 0 : i32
    %c0_i32_1 = arith.constant 0 : i32
    return %arg0, %c0_i32, %c0_i32_0 : i32, i32, i32
  }
}

</mosaic_0001>

<llo_original>
// kernel: gc_block_forward.1
$region0: #{gc_block_forward.1}
  #allocation0 [shape = 'u32[]', space=smem, size = 0x4, offset = 0x4, fixed_abs, tag = 'smem constant byte address 0x4 - core index']
  #allocation1 [shape = 'u32[72,128]{1,0:T(1,128)}', space=vmem, size = 0x9000, scoped, tag = 'internal scratch']
  #allocation2 [shape = 'f32[1,1]{1,0:T(1,128)S(1)}', space=vmem, size = 0x200, scoped, tag = 'scoped memory for gc_block_forward.1']
  %s0 = inlined_call_operand.vmem [shape: f32[2,128,256], index: 0, kind: input, shape index: {}]
  %s1 = inlined_call_operand.vmem [shape: f32[1,128], index: 1, kind: input, shape index: {}]
  %s2 = inlined_call_operand.<no memory space> [shape: f32[1,1], index: 2, kind: input, shape index: {}]
  %s3 = inlined_call_operand.vmem [shape: f32[8,128], index: 3, kind: input, shape index: {}]
  %s4 = inlined_call_operand.vmem [shape: f32[8,1], index: 4, kind: input, shape index: {}]
  %s5 = inlined_call_operand.vmem [shape: f32[128,8], index: 5, kind: input, shape index: {}]
  %s6 = inlined_call_operand.vmem [shape: f32[128,1], index: 6, kind: input, shape index: {}]
  %s7 = inlined_call_operand.vmem [shape: f32[2,128,256], index: 7, kind: output, shape index: {}]
  %s8 = sld [smem:[#allocation0]]
  $region61: #{gc_block_forward.1} parent=0
    _
  %s10 = ssub.s32 1, %s8
  %s11 = scalar_select 0, %s10, %s8
  %v12 = vstv %s2
  %13 = vst [vmem:[#allocation2] sm:$0x1] %v12
  loop: start=0, step=1, limit=4
  $region2: #{gc_block_forward.1} parent=0 // loop_pre_header
    _
  $region3: #{gc_block_forward.1} parent=0 // loop_header
    %s15 = sphi 0, %s19
    %p16 = scmp.ge.s32.totalorder %s15, 4
    %s25 = sphi 0, %s27
    %s28 = sphi 0, %s25
    %s29 = sphi 0, %s28
    %s45 = sphi 0, %s29
    %s49 = sphi 0, %s49
    %s51 = sphi 0, %s49
    %s52 = sphi 0, %s51
    %s66 = sphi 0, %s52
    %s70 = sphi 0, %s70
    %s72 = sphi 0, %s70
    %s73 = sphi 0, %s72
    %s87 = sphi 0, %s73
    %s91 = sphi 0, %s91
    %s93 = sphi 0, %s91
    %s94 = sphi 0, %s93
    %s108 = sphi 0, %s94
    %s112 = sphi 0, %s112
    %s114 = sphi 0, %s112
    %s115 = sphi 0, %s114
    %s129 = sphi 0, %s115
    %s133 = sphi 0, %s133
    %s135 = sphi 0, %s133
    %s136 = sphi 0, %s135
    %s150 = sphi 0, %s136
    %s154 = sphi 0, %s154
    %s156 = sphi 0, %s154
    %s157 = sphi 0, %s156
    %s171 = sphi 0, %s157
    %s177 = sphi 0, %s179
    %s180 = sphi 0, %s177
    %s181 = sphi 0, %s180
    %s197 = sphi 0, %s181
  $region4: #{gc_block_forward.1} parent=0 // loop_header_branch
    %18 = sbr.rel (%p16) target = $region8
  $region5: #{gc_block_forward.1} parent=0 // loop_body
    %s20 = ssub.s32 %s15, 1
    %s21 = ssub.s32 %s15, 2
    %s22 = sadd.s32 %s15, 1
    %s23 = ssub.s32 %s15, %s22
    %p24 = scmp.eq.s32.totalorder %s23, 0
    %s26 = sadd.s32 %s25, 1
    %s27 = scalar_select %p24, %s25, %s26
    %p30 = pneg %p24
    %p31 = scmp.eq.s32.totalorder %s15, 1
    %p32 = por %p30, %p31
    %p33 = scmp.ne.s32.totalorder %s25, %s28
    %p34 = scmp.eq.s32.totalorder %s15, 0
    %p35 = por %p33, %p34
    %p36 = scmp.ne.s32.totalorder %s25, %s28
    %p37 = scmp.eq.s32.totalorder %s20, 1
    %p38 = por %p36, %p37
    %p39 = scmp.ne.s32.totalorder %s28, %s29
    %p40 = scmp.eq.s32.totalorder %s20, 0
    %p41 = por %p39, %p40
    %p42 = scmp.ne.s32.totalorder %s28, %s29
    %p43 = scmp.eq.s32.totalorder %s21, 1
    %p44 = por %p42, %p43
    %p46 = scmp.ne.s32.totalorder %s29, %s45
    %p47 = scmp.eq.s32.totalorder %s21, 0
    %p48 = por %p46, %p47
    %s50 = sadd.s32 %s49, 1
    %p53 = scmp.eq.s32.totalorder %s15, 1
    %p54 = scmp.ne.s32.totalorder %s49, %s51
    %p55 = scmp.eq.s32.totalorder %s15, 0
    %p56 = por %p54, %p55
    %p57 = scmp.ne.s32.totalorder %s49, %s51
    %p58 = scmp.eq.s32.totalorder %s20, 1
    %p59 = por %p57, %p58
    %p60 = scmp.ne.s32.totalorder %s51, %s52
    %p61 = scmp.eq.s32.totalorder %s20, 0
    %p62 = por %p60, %p61
    %p63 = scmp.ne.s32.totalorder %s51, %s52
    %p64 = scmp.eq.s32.totalorder %s21, 1
    %p65 = por %p63, %p64
    %p67 = scmp.ne.s32.totalorder %s52, %s66
    %p68 = scmp.eq.s32.totalorder %s21, 0
    %p69 = por %p67, %p68
    %s71 = sadd.s32 %s70, 1
    %p74 = scmp.eq.s32.totalorder %s15, 1
    %p75 = scmp.ne.s32.totalorder %s70, %s72
    %p76 = scmp.eq.s32.totalorder %s15, 0
    %p77 = por %p75, %p76
    %p78 = scmp.ne.s32.totalorder %s70, %s72
    %p79 = scmp.eq.s32.totalorder %s20, 1
    %p80 = por %p78, %p79
    %p81 = scmp.ne.s32.totalorder %s72, %s73
    %p82 = scmp.eq.s32.totalorder %s20, 0
    %p83 = por %p81, %p82
    %p84 = scmp.ne.s32.totalorder %s72, %s73
    %p85 = scmp.eq.s32.totalorder %s21, 1
    %p86 = por %p84, %p85
    %p88 = scmp.ne.s32.totalorder %s73, %s87
    %p89 = scmp.eq.s32.totalorder %s21, 0
    %p90 = por %p88, %p89
    %s92 = sadd.s32 %s91, 1
    %p95 = scmp.eq.s32.totalorder %s15, 1
    %p96 = scmp.ne.s32.totalorder %s91, %s93
    %p97 = scmp.eq.s32.totalorder %s15, 0
    %p98 = por %p96, %p97
    %p99 = scmp.ne.s32.totalorder %s91, %s93
    %p100 = scmp.eq.s32.totalorder %s20, 1
    %p101 = por %p99, %p100
    %p102 = scmp.ne.s32.totalorder %s93, %s94
    %p103 = scmp.eq.s32.totalorder %s20, 0
    %p104 = por %p102, %p103
    %p105 = scmp.ne.s32.totalorder %s93, %s94
    %p106 = scmp.eq.s32.totalorder %s21, 1
    %p107 = por %p105, %p106
    %p109 = scmp.ne.s32.totalorder %s94, %s108
    %p110 = scmp.eq.s32.totalorder %s21, 0
    %p111 = por %p109, %p110
    %s113 = sadd.s32 %s112, 1
    %p116 = scmp.eq.s32.totalorder %s15, 1
    %p117 = scmp.ne.s32.totalorder %s112, %s114
    %p118 = scmp.eq.s32.totalorder %s15, 0
    %p119 = por %p117, %p118
    %p120 = scmp.ne.s32.totalorder %s112, %s114
    %p121 = scmp.eq.s32.totalorder %s20, 1
    %p122 = por %p120, %p121
    %p123 = scmp.ne.s32.totalorder %s114, %s115
    %p124 = scmp.eq.s32.totalorder %s20, 0
    %p125 = por %p123, %p124
    %p126 = scmp.ne.s32.totalorder %s114, %s115
    %p127 = scmp.eq.s32.totalorder %s21, 1
    %p128 = por %p126, %p127
    %p130 = scmp.ne.s32.totalorder %s115, %s129
    %p131 = scmp.eq.s32.totalorder %s21, 0
    %p132 = por %p130, %p131
    %s134 = sadd.s32 %s133, 1
    %p137 = scmp.eq.s32.totalorder %s15, 1
    %p138 = scmp.ne.s32.totalorder %s133, %s135
    %p139 = scmp.eq.s32.totalorder %s15, 0
    %p140 = por %p138, %p139
    %p141 = scmp.ne.s32.totalorder %s133, %s135
    %p142 = scmp.eq.s32.totalorder %s20, 1
    %p143 = por %p141, %p142
    %p144 = scmp.ne.s32.totalorder %s135, %s136
    %p145 = scmp.eq.s32.totalorder %s20, 0
    %p146 = por %p144, %p145
    %p147 = scmp.ne.s32.totalorder %s135, %s136
    %p148 = scmp.eq.s32.totalorder %s21, 1
    %p149 = por %p147, %p148
    %p151 = scmp.ne.s32.totalorder %s136, %s150
    %p152 = scmp.eq.s32.totalorder %s21, 0
    %p153 = por %p151, %p152
    %s155 = sadd.s32 %s154, 1
    %p158 = scmp.eq.s32.totalorder %s15, 1
    %p159 = scmp.ne.s32.totalorder %s154, %s156
    %p160 = scmp.eq.s32.totalorder %s15, 0
    %p161 = por %p159, %p160
    %p162 = scmp.ne.s32.totalorder %s154, %s156
    %p163 = scmp.eq.s32.totalorder %s20, 1
    %p164 = por %p162, %p163
    %p165 = scmp.ne.s32.totalorder %s156, %s157
    %p166 = scmp.eq.s32.totalorder %s20, 0
    %p167 = por %p165, %p166
    %p168 = scmp.ne.s32.totalorder %s156, %s157
    %p169 = scmp.eq.s32.totalorder %s21, 1
    %p170 = por %p168, %p169
    %p172 = scmp.ne.s32.totalorder %s157, %s171
    %p173 = scmp.eq.s32.totalorder %s21, 0
    %p174 = por %p172, %p173
    %s175 = ssub.s32 %s15, %s22
    %p176 = scmp.eq.s32.totalorder %s175, 0
    %s178 = sadd.s32 %s177, 1
    %s179 = scalar_select %p176, %s177, %s178
    %p182 = pneg %p176
    %p183 = scmp.eq.s32.totalorder %s15, 1
    %p184 = por %p182, %p183
    %p185 = scmp.ne.s32.totalorder %s177, %s180
    %p186 = scmp.eq.s32.totalorder %s15, 0
    %p187 = por %p185, %p186
    %p188 = scmp.ne.s32.totalorder %s177, %s180
    %p189 = scmp.eq.s32.totalorder %s20, 1
    %p190 = por %p188, %p189
    %p191 = scmp.ne.s32.totalorder %s180, %s181
    %p192 = scmp.eq.s32.totalorder %s20, 0
    %p193 = por %p191, %p192
    %p194 = scmp.ne.s32.totalorder %s180, %s181
    %p195 = scmp.eq.s32.totalorder %s21, 1
    %p196 = por %p194, %p195
    %p198 = scmp.ne.s32.totalorder %s181, %s197
    %p199 = scmp.eq.s32.totalorder %s21, 0
    %p200 = por %p198, %p199
    %p201 = scmp.le.s32.totalorder 1, %s15
    %p202 = scmp.lt.s32.totalorder %s15, 3
    %p203 = pnand %p201, %p202
    %p204 = pneg %p203
    // Predicated region
    $region9: #{gc_block_forward.1} parent=5 // pred_check
      _
    $region10: #{gc_block_forward.1} parent=5 // pred_check_branch
      %206 = sbr.rel (%p203) target = $region12
    $region11: #{gc_block_forward.1} parent=5 // pred_region
      %s207 = ssub.s32 %s15, 1
      // Predicated region
      $region13: #{gc_block_forward.1} parent=11 // pred_check
        %p208 = pneg %p62
      $region14: #{gc_block_forward.1} parent=11 // pred_check_branch
        %210 = sbr.rel (%p208) target = $region16
      $region15: #{gc_block_forward.1} parent=11 // pred_region
        _
      $region16: #{gc_block_forward.1} parent=11 // pred_fallthru
        _
      // Predicated region
      $region17: #{gc_block_forward.1} parent=11 // pred_check
        %p211 = pneg %p83
      $region18: #{gc_block_forward.1} parent=11 // pred_check_branch
        %213 = sbr.rel (%p211) target = $region20
      $region19: #{gc_block_forward.1} parent=11 // pred_region
        _
      $region20: #{gc_block_forward.1} parent=11 // pred_fallthru
        _
      // Predicated region
      $region21: #{gc_block_forward.1} parent=11 // pred_check
        %p214 = pneg %p104
      $region22: #{gc_block_forward.1} parent=11 // pred_check_branch
        %216 = sbr.rel (%p214) target = $region24
      $region23: #{gc_block_forward.1} parent=11 // pred_region
        _
      $region24: #{gc_block_forward.1} parent=11 // pred_fallthru
        _
      // Predicated region
      $region25: #{gc_block_forward.1} parent=11 // pred_check
        %p217 = pneg %p125
      $region26: #{gc_block_forward.1} parent=11 // pred_check_branch
        %219 = sbr.rel (%p217) target = $region28
      $region27: #{gc_block_forward.1} parent=11 // pred_region
        _
      $region28: #{gc_block_forward.1} parent=11 // pred_fallthru
        _
      // Predicated region
      $region29: #{gc_block_forward.1} parent=11 // pred_check
        %p220 = pneg %p146
      $region30: #{gc_block_forward.1} parent=11 // pred_check_branch
        %222 = sbr.rel (%p220) target = $region32
      $region31: #{gc_block_forward.1} parent=11 // pred_region
        _
      $region32: #{gc_block_forward.1} parent=11 // pred_fallthru
        _
      // Predicated region
      $region33: #{gc_block_forward.1} parent=11 // pred_check
        %p223 = pneg %p167
      $region34: #{gc_block_forward.1} parent=11 // pred_check_branch
        %225 = sbr.rel (%p223) target = $region36
      $region35: #{gc_block_forward.1} parent=11 // pred_region
        _
      $region36: #{gc_block_forward.1} parent=11 // pred_fallthru
        _
    $region12: #{gc_block_forward.1} parent=5 // pred_fallthru
      _
    %p226 = scmp.lt.s32.totalorder %s15, 2
    // Predicated region
    $region37: #{gc_block_forward.1} parent=5 // pred_check
      %p227 = pneg %p226
    $region38: #{gc_block_forward.1} parent=5 // pred_check_branch
      %229 = sbr.rel (%p227) target = $region40
    $region39: #{gc_block_forward.1} parent=5 // pred_region
      // Predicated region
      $region41: #{gc_block_forward.1} parent=39 // pred_check
        %p230 = pneg %p35
      $region42: #{gc_block_forward.1} parent=39 // pred_check_branch
        %232 = sbr.rel (%p230) target = $region44
      $region43: #{gc_block_forward.1} parent=39 // pred_region
        %p233 = scmp.lt.s32.totalorder %s15, 1
        %s234 = scalar_select %p233, %s15, 1
        %s235 = smul.addr %s234, 32
        %s236 = smul.addr %s235, 8
        %s237 = scalar_lea.vmem %s0, %s236
      $region44: #{gc_block_forward.1} parent=39 // pred_fallthru
        _
    $region40: #{gc_block_forward.1} parent=5 // pred_fallthru
      _
    %p238 = scmp.le.s32.totalorder 1, %s15
    %p239 = scmp.lt.s32.totalorder %s15, 3
    %p240 = pnand %p238, %p239
    %p241 = pneg %p240
    // Predicated region
    $region45: #{gc_block_forward.1} parent=5 // pred_check
      _
    $region46: #{gc_block_forward.1} parent=5 // pred_check_branch
      %243 = sbr.rel (%p240) target = $region48
    $region47: #{gc_block_forward.1} parent=5 // pred_region
      %s244 = ssub.s32 %s15, 1
      %p245 = scmp.lt.s32.totalorder %s20, 1
      %s246 = scalar_select %p245, %s20, 1
      %s247 = smul.addr %s246, 32
      %s248 = smul.addr %s247, 8
      %s249 = scalar_lea.vmem %s0, %s248
      %p250 = pneg %p41
      %p251 = pneg %p38
      %p252 = pneg %p62
      %p253 = pneg %p59
      %p254 = pneg %p83
      %p255 = pneg %p80
      %p256 = pneg %p104
      %p257 = pneg %p101
      %p258 = pneg %p125
      %p259 = pneg %p122
      %p260 = pneg %p146
      %p261 = pneg %p143
      %p262 = pneg %p167
      %p263 = pneg %p164
      %p264 = pneg %p193
      %p265 = pneg %p190
      %p266 = scmp.lt.s32.totalorder %s20, 1
      %s267 = scalar_select %p266, %s20, 1
      %s268 = smul.addr %s267, 32
      %s269 = smul.addr %s268, 8
      %s270 = scalar_lea.vmem %s7, %s269
      %p271 = scmp.lt.s32.totalorder %s20, 1
      %s272 = scalar_select %p271, %s20, 1
      %s273 = smul.addr %s272, 32
      %s274 = smul.addr %s273, 8
      %s275 = scalar_lea.vmem %s0, %s274
      %p276 = scmp.lt.s32.totalorder %s20, 1
      %s277 = scalar_select %p276, %s20, 1
      %s278 = smul.addr %s277, 32
      %s279 = smul.addr %s278, 8
      %s280 = scalar_lea.vmem %s7, %s279
      %v281 = vld [vmem:[%s275] sm:$0xff]
      %v282 = vld [vmem:[%s275 + $0x8] sm:$0xff]
      %v283 = vld [vmem:[%s275 + $0x10] sm:$0xff]
      %v284 = vld [vmem:[%s275 + $0x18] sm:$0xff]
      %v285 = vld [vmem:[%s275 + $0x20] sm:$0xff]
      %v286 = vld [vmem:[%s275 + $0x28] sm:$0xff]
      %v287 = vld [vmem:[%s275 + $0x30] sm:$0xff]
      %v288 = vld [vmem:[%s275 + $0x38] sm:$0xff]
      %v289 = vld [vmem:[%s275 + $0x40] sm:$0xff]
      %v290 = vld [vmem:[%s275 + $0x48] sm:$0xff]
      %v291 = vld [vmem:[%s275 + $0x50] sm:$0xff]
      %v292 = vld [vmem:[%s275 + $0x58] sm:$0xff]
      %v293 = vld [vmem:[%s275 + $0x60] sm:$0xff]
      %v294 = vld [vmem:[%s275 + $0x68] sm:$0xff]
      %v295 = vld [vmem:[%s275 + $0x70] sm:$0xff]
      %v296 = vld [vmem:[%s275 + $0x78] sm:$0xff]
      %v297 = vld [vmem:[%s275 + $0x80] sm:$0xff]
      %v298 = vld [vmem:[%s275 + $0x88] sm:$0xff]
      %v299 = vld [vmem:[%s275 + $0x90] sm:$0xff]
      %v300 = vld [vmem:[%s275 + $0x98] sm:$0xff]
      %v301 = vld [vmem:[%s275 + $0xa0] sm:$0xff]
      %v302 = vld [vmem:[%s275 + $0xa8] sm:$0xff]
      %v303 = vld [vmem:[%s275 + $0xb0] sm:$0xff]
      %v304 = vld [vmem:[%s275 + $0xb8] sm:$0xff]
      %v305 = vld [vmem:[%s275 + $0xc0] sm:$0xff]
      %v306 = vld [vmem:[%s275 + $0xc8] sm:$0xff]
      %v307 = vld [vmem:[%s275 + $0xd0] sm:$0xff]
      %v308 = vld [vmem:[%s275 + $0xd8] sm:$0xff]
      %v309 = vld [vmem:[%s275 + $0xe0] sm:$0xff]
      %v310 = vld [vmem:[%s275 + $0xe8] sm:$0xff]
      %v311 = vld [vmem:[%s275 + $0xf0] sm:$0xff]
      %v312 = vld [vmem:[%s275 + $0xf8] sm:$0xff]
      %v313 = vld [vmem:[%s1] sm:$0x1]
      %v314 = vld [vmem:[#allocation2] sm:$0x1]
      %316 = vset.pattern.permute.xlu0 0
      %317 = vperm.xlu0 %316, %v314
      %v318 = vpop.permute.xlu0 %317
      %v320 = vperm.slane %v318, 0
      %321 = vmatpush.msra.mxu0 %v311
      %322 = vmatpush.msra.mxu0 %v309
      %323 = vmatpush.msra.mxu0 %v307
      %324 = vmatpush.msra.mxu0 %v305
      %325 = vmatpush.msra.mxu0 %v303
      %326 = vmatpush.msra.mxu0 %v301
      %327 = vmatpush.msra.mxu0 %v299
      %328 = vmatpush.msra.mxu0 %v297
      %329 = vmatpush.msra.mxu0 %v295
      %330 = vmatpush.msra.mxu0 %v293
      %331 = vmatpush.msra.mxu0 %v291
      %332 = vmatpush.msra.mxu0 %v289
      %333 = vmatpush.msra.mxu0 %v287
      %334 = vmatpush.msra.mxu0 %v285
      %335 = vmatpush.msra.mxu0 %v283
      %336 = vmatpush.msra.mxu0 %v281
      %337 = vmatmul.f32.gmra.mxu0 %v313
      %v338 = vpop.f32.mrf.mxu0
      %v339 = vadd.f32 %v320, %v338
      %340 = vdwg.mxu0
      %341 = vmatpush.msra.mxu0 %v312
      %342 = vmatpush.msra.mxu0 %v310
      %343 = vmatpush.msra.mxu0 %v308
      %344 = vmatpush.msra.mxu0 %v306
      %345 = vmatpush.msra.mxu0 %v304
      %346 = vmatpush.msra.mxu0 %v302
      %347 = vmatpush.msra.mxu0 %v300
      %348 = vmatpush.msra.mxu0 %v298
      %349 = vmatpush.msra.mxu0 %v296
      %350 = vmatpush.msra.mxu0 %v294
      %351 = vmatpush.msra.mxu0 %v292
      %352 = vmatpush.msra.mxu0 %v290
      %353 = vmatpush.msra.mxu0 %v288
      %354 = vmatpush.msra.mxu0 %v286
      %355 = vmatpush.msra.mxu0 %v284
      %356 = vmatpush.msra.mxu0 %v282
      %357 = vmatmul.f32.gmra.mxu0 %v313
      %v358 = vpop.f32.mrf.mxu0
      %v359 = vadd.f32 %v320, %v358
      %360 = vdwg.mxu0
      %v361 = vmax.f32 %v281, %v285
      %v362 = vmax.f32 %v283, %v287
      %v363 = vmax.f32 %v361, %v289
      %v364 = vmax.f32 %v362, %v291
      %v365 = vmax.f32 %v363, %v293
      %v366 = vmax.f32 %v364, %v295
      %v367 = vmax.f32 %v365, %v297
      %v368 = vmax.f32 %v366, %v299
      %v369 = vmax.f32 %v367, %v301
      %v370 = vmax.f32 %v368, %v303
      %v371 = vmax.f32 %v369, %v305
      %v372 = vmax.f32 %v370, %v307
      %v373 = vmax.f32 %v371, %v309
      %v374 = vmax.f32 %v372, %v311
      %v375 = vmax.f32 %v373, %v374
      %v376 = vrot.slane %v375, 4
      %v377 = vmax.f32 %v375, %v376
      %v378 = vrot.slane %v377, 2
      %v379 = vmax.f32 %v377, %v378
      %v380 = vrot.slane %v379, 1
      %v381 = vmax.f32 %v379, %v380
      %v382 = vmax.f32 %v282, %v286
      %v383 = vmax.f32 %v284, %v288
      %v384 = vmax.f32 %v382, %v290
      %v385 = vmax.f32 %v383, %v292
      %v386 = vmax.f32 %v384, %v294
      %v387 = vmax.f32 %v385, %v296
      %v388 = vmax.f32 %v386, %v298
      %v389 = vmax.f32 %v387, %v300
      %v390 = vmax.f32 %v388, %v302
      %v391 = vmax.f32 %v389, %v304
      %v392 = vmax.f32 %v390, %v306
      %v393 = vmax.f32 %v391, %v308
      %v394 = vmax.f32 %v392, %v310
      %v395 = vmax.f32 %v393, %v312
      %v396 = vmax.f32 %v394, %v395
      %v397 = vrot.slane %v396, 4
      %v398 = vmax.f32 %v396, %v397
      %v399 = vrot.slane %v398, 2
      %v400 = vmax.f32 %v398, %v399
      %v401 = vrot.slane %v400, 1
      %v402 = vmax.f32 %v400, %v401
      %v403 = vsub.f32 %v281, %v381
      %v404 = vsub.f32 %v282, %v402
      %v405 = vsub.f32 %v283, %v381
      %v406 = vsub.f32 %v284, %v402
      %v407 = vsub.f32 %v285, %v381
      %v408 = vsub.f32 %v286, %v402
      %v409 = vsub.f32 %v287, %v381
      %v410 = vsub.f32 %v288, %v402
      %v411 = vsub.f32 %v289, %v381
      %v412 = vsub.f32 %v290, %v402
      %v413 = vsub.f32 %v291, %v381
      %v414 = vsub.f32 %v292, %v402
      %v415 = vsub.f32 %v293, %v381
      %v416 = vsub.f32 %v294, %v402
      %v417 = vsub.f32 %v295, %v381
      %v418 = vsub.f32 %v296, %v402
      %v419 = vsub.f32 %v297, %v381
      %v420 = vsub.f32 %v298, %v402
      %v421 = vsub.f32 %v299, %v381
      %v422 = vsub.f32 %v300, %v402
      %v423 = vsub.f32 %v301, %v381
      %v424 = vsub.f32 %v302, %v402
      %v425 = vsub.f32 %v303, %v381
      %v426 = vsub.f32 %v304, %v402
      %v427 = vsub.f32 %v305, %v381
      %v428 = vsub.f32 %v306, %v402
      %v429 = vsub.f32 %v307, %v381
      %v430 = vsub.f32 %v308, %v402
      %v431 = vsub.f32 %v309, %v381
      %v432 = vsub.f32 %v310, %v402
      %v433 = vsub.f32 %v311, %v381
      %v434 = vsub.f32 %v312, %v402
      %v435 = vmul.f32 %v403, 1.442695
      %v436 = vpow.pop %v435
      %v437 = vmul.f32 %v404, 1.442695
      %v438 = vpow.pop %v437
      %v439 = vmul.f32 %v405, 1.442695
      %v440 = vpow.pop %v439
      %v441 = vmul.f32 %v406, 1.442695
      %v442 = vpow.pop %v441
      %v443 = vmul.f32 %v407, 1.442695
      %v444 = vpow.pop %v443
      %v445 = vmul.f32 %v408, 1.442695
      %v446 = vpow.pop %v445
      %v447 = vmul.f32 %v409, 1.442695
      %v448 = vpow.pop %v447
      %v449 = vmul.f32 %v410, 1.442695
      %v450 = vpow.pop %v449
      %v451 = vmul.f32 %v411, 1.442695
      %v452 = vpow.pop %v451
      %v453 = vmul.f32 %v412, 1.442695
      %v454 = vpow.pop %v453
      %v455 = vmul.f32 %v413, 1.442695
      %v456 = vpow.pop %v455
      %v457 = vmul.f32 %v414, 1.442695
      %v458 = vpow.pop %v457
      %v459 = vmul.f32 %v415, 1.442695
      %v460 = vpow.pop %v459
      %v461 = vmul.f32 %v416, 1.442695
      %v462 = vpow.pop %v461
      %v463 = vmul.f32 %v417, 1.442695
      %v464 = vpow.pop %v463
      %v465 = vmul.f32 %v418, 1.442695
      %v466 = vpow.pop %v465
      %v467 = vmul.f32 %v419, 1.442695
      %v468 = vpow.pop %v467
      %v469 = vmul.f32 %v420, 1.442695
      %v470 = vpow.pop %v469
      %v471 = vmul.f32 %v421, 1.442695
      %v472 = vpow.pop %v471
      %v473 = vmul.f32 %v422, 1.442695
      %v474 = vpow.pop %v473
      %v475 = vmul.f32 %v423, 1.442695
      %v476 = vpow.pop %v475
      %v477 = vmul.f32 %v424, 1.442695
      %v478 = vpow.pop %v477
      %v479 = vmul.f32 %v425, 1.442695
      %v480 = vpow.pop %v479
      %v481 = vmul.f32 %v426, 1.442695
      %v482 = vpow.pop %v481
      %v483 = vmul.f32 %v427, 1.442695
      %v484 = vpow.pop %v483
      %v485 = vmul.f32 %v428, 1.442695
      %v486 = vpow.pop %v485
      %v487 = vmul.f32 %v429, 1.442695
      %v488 = vpow.pop %v487
      %v489 = vmul.f32 %v430, 1.442695
      %v490 = vpow.pop %v489
      %v491 = vmul.f32 %v431, 1.442695
      %v492 = vpow.pop %v491
      %v493 = vmul.f32 %v432, 1.442695
      %v494 = vpow.pop %v493
      %v495 = vmul.f32 %v433, 1.442695
      %v496 = vpow.pop %v495
      %v497 = vmul.f32 %v434, 1.442695
      %v498 = vpow.pop %v497
      %499 = vmatpush.msra.mxu0 %v496
      %500 = vmatpush.msra.mxu0 %v492
      %501 = vmatpush.msra.mxu0 %v488
      %502 = vmatpush.msra.mxu0 %v484
      %503 = vmatpush.msra.mxu0 %v480
      %504 = vmatpush.msra.mxu0 %v476
      %505 = vmatpush.msra.mxu0 %v472
      %506 = vmatpush.msra.mxu0 %v468
      %507 = vmatpush.msra.mxu0 %v464
      %508 = vmatpush.msra.mxu0 %v460
      %509 = vmatpush.msra.mxu0 %v456
      %510 = vmatpush.msra.mxu0 %v452
      %511 = vmatpush.msra.mxu0 %v448
      %512 = vmatpush.msra.mxu0 %v444
      %513 = vmatpush.msra.mxu0 %v440
      %514 = vmatpush.msra.mxu0 %v436
      %515 = vmatmul.f32.gmra.mxu0 1.0
      %v516 = vpop.f32.mrf.mxu0
      %v517 = vadd.f32 0.0, %v516
      %518 = vdwg.mxu0
      %519 = vmatpush.msra.mxu0 %v498
      %520 = vmatpush.msra.mxu0 %v494
      %521 = vmatpush.msra.mxu0 %v490
      %522 = vmatpush.msra.mxu0 %v486
      %523 = vmatpush.msra.mxu0 %v482
      %524 = vmatpush.msra.mxu0 %v478
      %525 = vmatpush.msra.mxu0 %v474
      %526 = vmatpush.msra.mxu0 %v470
      %527 = vmatpush.msra.mxu0 %v466
      %528 = vmatpush.msra.mxu0 %v462
      %529 = vmatpush.msra.mxu0 %v458
      %530 = vmatpush.msra.mxu0 %v454
      %531 = vmatpush.msra.mxu0 %v450
      %532 = vmatpush.msra.mxu0 %v446
      %533 = vmatpush.msra.mxu0 %v442
      %534 = vmatpush.msra.mxu0 %v438
      %535 = vmatmul.f32.gmra.mxu0 1.0
      %v536 = vpop.f32.mrf.mxu0
      %v537 = vadd.f32 0.0, %v536
      %538 = vdwg.mxu0
      %v539 = vrcp.pop %v517
      %v540 = vmul.f32 %v517, %v539
      %v541 = vsub.f32 1.0, %v540
      %v542 = vmul.f32 %v539, %v541
      %v543 = vadd.f32 %v539, %v542
      %vm544 = vweird.f32 %v517
      %vm545 = vweird.f32 %v539
      %vm546 = vmor %vm544, %vm545
      %v547 = vsel %vm546, %v539, %v543
      %v548 = vand.u32 2147483647, %v517
      %vm549 = vcmp.eq.f32.partialorder %v548, 8.507059e+37
      %v550 = vand.u32 %v517, 2147483648
      %v551 = vor.u32 1.1754944e-38, %v550
      %v552 = vsel %vm549, %v551, %v547
      %v553 = vmul.f32 1.0, %v552
      %v554 = vrcp.pop %v537
      %v555 = vmul.f32 %v537, %v554
      %v556 = vsub.f32 1.0, %v555
      %v557 = vmul.f32 %v554, %v556
      %v558 = vadd.f32 %v554, %v557
      %vm559 = vweird.f32 %v537
      %vm560 = vweird.f32 %v554
      %vm561 = vmor %vm559, %vm560
      %v562 = vsel %vm561, %v554, %v558
      %v563 = vand.u32 2147483647, %v537
      %vm564 = vcmp.eq.f32.partialorder %v563, 8.507059e+37
      %v565 = vand.u32 %v537, 2147483648
      %v566 = vor.u32 1.1754944e-38, %v565
      %v567 = vsel %vm564, %v566, %v562
      %v568 = vmul.f32 1.0, %v567
      %v569 = vmul.f32 %v339, %v553
      %v570 = vmul.f32 %v359, %v568
      %v571 = vperm.slane %v569, 0
      %v572 = vperm.slane %v570, 0
      %v573 = vmul.f32 %v436, %v571
      %v574 = vmul.f32 %v438, %v572
      %v575 = vmul.f32 %v440, %v571
      %v576 = vmul.f32 %v442, %v572
      %v577 = vmul.f32 %v444, %v571
      %v578 = vmul.f32 %v446, %v572
      %v579 = vmul.f32 %v448, %v571
      %v580 = vmul.f32 %v450, %v572
      %v581 = vmul.f32 %v452, %v571
      %v582 = vmul.f32 %v454, %v572
      %v583 = vmul.f32 %v456, %v571
      %v584 = vmul.f32 %v458, %v572
      %v585 = vmul.f32 %v460, %v571
      %v586 = vmul.f32 %v462, %v572
      %v587 = vmul.f32 %v464, %v571
      %v588 = vmul.f32 %v466, %v572
      %v589 = vmul.f32 %v468, %v571
      %v590 = vmul.f32 %v470, %v572
      %v591 = vmul.f32 %v472, %v571
      %v592 = vmul.f32 %v474, %v572
      %v593 = vmul.f32 %v476, %v571
      %v594 = vmul.f32 %v478, %v572
      %v595 = vmul.f32 %v480, %v571
      %v596 = vmul.f32 %v482, %v572
      %v597 = vmul.f32 %v484, %v571
      %v598 = vmul.f32 %v486, %v572
      %v599 = vmul.f32 %v488, %v571
      %v600 = vmul.f32 %v490, %v572
      %v601 = vmul.f32 %v492, %v571
      %v602 = vmul.f32 %v494, %v572
      %v603 = vmul.f32 %v496, %v571
      %v604 = vmul.f32 %v498, %v572
      %v605 = vadd.f32 %v573, %v574
      %606 = vadd.xlane.f32.xlu0 %v605
      %v607 = vpop.xlane.xlu0 %606
      %v608 = vadd.f32 %v575, %v576
      %609 = vadd.xlane.f32.xlu0 %v608
      %v610 = vpop.xlane.xlu0 %609
      %v611 = vadd.f32 %v577, %v578
      %612 = vadd.xlane.f32.xlu0 %v611
      %v613 = vpop.xlane.xlu0 %612
      %v614 = vadd.f32 %v579, %v580
      %615 = vadd.xlane.f32.xlu0 %v614
      %v616 = vpop.xlane.xlu0 %615
      %v617 = vadd.f32 %v581, %v582
      %618 = vadd.xlane.f32.xlu0 %v617
      %v619 = vpop.xlane.xlu0 %618
      %v620 = vadd.f32 %v583, %v584
      %621 = vadd.xlane.f32.xlu0 %v620
      %v622 = vpop.xlane.xlu0 %621
      %v623 = vadd.f32 %v585, %v586
      %624 = vadd.xlane.f32.xlu0 %v623
      %v625 = vpop.xlane.xlu0 %624
      %v626 = vadd.f32 %v587, %v588
      %627 = vadd.xlane.f32.xlu0 %v626
      %v628 = vpop.xlane.xlu0 %627
      %v629 = vadd.f32 %v589, %v590
      %630 = vadd.xlane.f32.xlu0 %v629
      %v631 = vpop.xlane.xlu0 %630
      %v632 = vadd.f32 %v591, %v592
      %633 = vadd.xlane.f32.xlu0 %v632
      %v634 = vpop.xlane.xlu0 %633
      %v635 = vadd.f32 %v593, %v594
      %636 = vadd.xlane.f32.xlu0 %v635
      %v637 = vpop.xlane.xlu0 %636
      %v638 = vadd.f32 %v595, %v596
      %639 = vadd.xlane.f32.xlu0 %v638
      %v640 = vpop.xlane.xlu0 %639
      %v641 = vadd.f32 %v597, %v598
      %642 = vadd.xlane.f32.xlu0 %v641
      %v643 = vpop.xlane.xlu0 %642
      %v644 = vadd.f32 %v599, %v600
      %645 = vadd.xlane.f32.xlu0 %v644
      %v646 = vpop.xlane.xlu0 %645
      %v647 = vadd.f32 %v601, %v602
      %648 = vadd.xlane.f32.xlu0 %v647
      %v649 = vpop.xlane.xlu0 %648
      %v650 = vadd.f32 %v603, %v604
      %651 = vadd.xlane.f32.xlu0 %v650
      %v652 = vpop.xlane.xlu0 %651
      %v653 = vld [vmem:[%s3] sm:$0xff]
      %v654 = vld [vmem:[%s4] sm:$0xff]
      %655 = vmatpush.msra.mxu0 %v652
      %656 = vmatpush.msra.mxu0 %v649
      %657 = vmatpush.msra.mxu0 %v646
      %658 = vmatpush.msra.mxu0 %v643
      %659 = vmatpush.msra.mxu0 %v640
      %660 = vmatpush.msra.mxu0 %v637
      %661 = vmatpush.msra.mxu0 %v634
      %662 = vmatpush.msra.mxu0 %v631
      %663 = vmatpush.msra.mxu0 %v628
      %664 = vmatpush.msra.mxu0 %v625
      %665 = vmatpush.msra.mxu0 %v622
      %666 = vmatpush.msra.mxu0 %v619
      %667 = vmatpush.msra.mxu0 %v616
      %668 = vmatpush.msra.mxu0 %v613
      %669 = vmatpush.msra.mxu0 %v610
      %670 = vmatpush.msra.mxu0 %v607
      %671 = vmatmul.f32.gmra.mxu0 %v653
      %v672 = vpop.f32.mrf.mxu0
      %v673 = vadd.f32 %v654, %v672
      %674 = vdwg.mxu0
      %vm675 = vcmask 7168
      %v676 = vsel %vm675, %v673, 0.0
      %v677 = vrot.slane %v676, 4
      %v678 = vadd.f32 %v676, %v677
      %v679 = vrot.slane %v678, 2
      %v680 = vadd.f32 %v678, %v679
      %v681 = vrot.slane %v680, 1
      %v682 = vadd.f32 %v680, %v681
      %v683 = vrcp.pop 8.0
      %v684 = vmul.f32 8.0, %v683
      %v685 = vsub.f32 1.0, %v684
      %v686 = vmul.f32 %v683, %v685
      %v687 = vadd.f32 %v683, %v686
      %vm688 = vweird.f32 %v683
      %v689 = vsel %vm688, %v683, %v687
      %v690 = vmul.f32 %v682, %v689
      %v691 = vsub.f32 %v673, %v690
      %v692 = vmul.f32 %v691, %v691
      %v693 = vsel %vm675, %v692, 0.0
      %v694 = vrot.slane %v693, 4
      %v695 = vadd.f32 %v693, %v694
      %v696 = vrot.slane %v695, 2
      %v697 = vadd.f32 %v695, %v696
      %v698 = vrot.slane %v697, 1
      %v699 = vadd.f32 %v697, %v698
      %v700 = vmul.f32 %v699, %v689
      %v701 = vadd.f32 %v700, 1e-05
      %v702 = vrsqrt.pop %v701
      %v703 = vmul.f32 %v702, %v701
      %v704 = vmul.f32 %v703, %v702
      %v705 = vmul.f32 0.5, %v704
      %v706 = vsub.f32 1.5, %v705
      %v707 = vmul.f32 %v702, %v706
      %vm708 = vweird.f32 %v701
      %vm709 = vweird.f32 %v702
      %vm710 = vmor %vm708, %vm709
      %v711 = vsel %vm710, %v702, %v707
      %v712 = vmul.f32 %v691, %v711
      %v713 = vmax.f32 %v712, 0.0
      %v714 = vld [vmem:[%s5] sm:$0xff]
      %v715 = vld [vmem:[%s5 + $0x8] sm:$0xff]
      %v716 = vld [vmem:[%s5 + $0x10] sm:$0xff]
      %v717 = vld [vmem:[%s5 + $0x18] sm:$0xff]
      %v718 = vld [vmem:[%s5 + $0x20] sm:$0xff]
      %v719 = vld [vmem:[%s5 + $0x28] sm:$0xff]
      %v720 = vld [vmem:[%s5 + $0x30] sm:$0xff]
      %v721 = vld [vmem:[%s5 + $0x38] sm:$0xff]
      %v722 = vld [vmem:[%s5 + $0x40] sm:$0xff]
      %v723 = vld [vmem:[%s5 + $0x48] sm:$0xff]
      %v724 = vld [vmem:[%s5 + $0x50] sm:$0xff]
      %v725 = vld [vmem:[%s5 + $0x58] sm:$0xff]
      %v726 = vld [vmem:[%s5 + $0x60] sm:$0xff]
      %v727 = vld [vmem:[%s5 + $0x68] sm:$0xff]
      %v728 = vld [vmem:[%s5 + $0x70] sm:$0xff]
      %v729 = vld [vmem:[%s5 + $0x78] sm:$0xff]
      %v730 = vld [vmem:[%s6] sm:$0xff]
      %v731 = vld [vmem:[%s6 + $0x8] sm:$0xff]
      %v732 = vld [vmem:[%s6 + $0x10] sm:$0xff]
      %v733 = vld [vmem:[%s6 + $0x18] sm:$0xff]
      %v734 = vld [vmem:[%s6 + $0x20] sm:$0xff]
      %v735 = vld [vmem:[%s6 + $0x28] sm:$0xff]
      %v736 = vld [vmem:[%s6 + $0x30] sm:$0xff]
      %v737 = vld [vmem:[%s6 + $0x38] sm:$0xff]
      %v738 = vld [vmem:[%s6 + $0x40] sm:$0xff]
      %v739 = vld [vmem:[%s6 + $0x48] sm:$0xff]
      %v740 = vld [vmem:[%s6 + $0x50] sm:$0xff]
      %v741 = vld [vmem:[%s6 + $0x58] sm:$0xff]
      %v742 = vld [vmem:[%s6 + $0x60] sm:$0xff]
      %v743 = vld [vmem:[%s6 + $0x68] sm:$0xff]
      %v744 = vld [vmem:[%s6 + $0x70] sm:$0xff]
      %v745 = vld [vmem:[%s6 + $0x78] sm:$0xff]
      %vm746 = vcmask 64512
      %v748 = vsel %vm746, %v714, 0
      %v751 = vsel %vm746, %v715, 0
      %v754 = vsel %vm746, %v716, 0
      %v757 = vsel %vm746, %v717, 0
      %v760 = vsel %vm746, %v718, 0
      %v763 = vsel %vm746, %v719, 0
      %v766 = vsel %vm746, %v720, 0
      %v769 = vsel %vm746, %v721, 0
      %v772 = vsel %vm746, %v722, 0
      %v775 = vsel %vm746, %v723, 0
      %v778 = vsel %vm746, %v724, 0
      %v781 = vsel %vm746, %v725, 0
      %v784 = vsel %vm746, %v726, 0
      %v787 = vsel %vm746, %v727, 0
      %v790 = vsel %vm746, %v728, 0
      %v793 = vsel %vm746, %v729, 0
      %795 = vmatpush.msra.mxu0 0.0
      %796 = vmatpush.msra.mxu0 0.0
      %797 = vmatpush.msra.mxu0 0.0
      %798 = vmatpush.msra.mxu0 0.0
      %799 = vmatpush.msra.mxu0 0.0
      %800 = vmatpush.msra.mxu0 0.0
      %801 = vmatpush.msra.mxu0 0.0
      %802 = vmatpush.msra.mxu0 0.0
      %803 = vmatpush.msra.mxu0 0.0
      %804 = vmatpush.msra.mxu0 0.0
      %805 = vmatpush.msra.mxu0 0.0
      %806 = vmatpush.msra.mxu0 0.0
      %807 = vmatpush.msra.mxu0 0.0
      %808 = vmatpush.msra.mxu0 0.0
      %809 = vmatpush.msra.mxu0 0.0
      %810 = vmatpush.msra.mxu0 %v713
      %811 = vmatmul.f32.gmra.mxu0 %v748
      %v812 = vpop.f32.mrf.mxu0
      %v813 = vadd.f32 %v730, %v812
      %814 = vmatmul.f32.gmra.mxu0 %v751
      %v815 = vpop.f32.mrf.mxu0
      %v816 = vadd.f32 %v731, %v815
      %817 = vmatmul.f32.gmra.mxu0 %v754
      %v818 = vpop.f32.mrf.mxu0
      %v819 = vadd.f32 %v732, %v818
      %820 = vmatmul.f32.gmra.mxu0 %v757
      %v821 = vpop.f32.mrf.mxu0
      %v822 = vadd.f32 %v733, %v821
      %823 = vmatmul.f32.gmra.mxu0 %v760
      %v824 = vpop.f32.mrf.mxu0
      %v825 = vadd.f32 %v734, %v824
      %826 = vmatmul.f32.gmra.mxu0 %v763
      %v827 = vpop.f32.mrf.mxu0
      %v828 = vadd.f32 %v735, %v827
      %829 = vmatmul.f32.gmra.mxu0 %v766
      %v830 = vpop.f32.mrf.mxu0
      %v831 = vadd.f32 %v736, %v830
      %832 = vmatmul.f32.gmra.mxu0 %v769
      %v833 = vpop.f32.mrf.mxu0
      %v834 = vadd.f32 %v737, %v833
      %835 = vmatmul.f32.gmra.mxu0 %v772
      %v836 = vpop.f32.mrf.mxu0
      %v837 = vadd.f32 %v738, %v836
      %838 = vmatmul.f32.gmra.mxu0 %v775
      %v839 = vpop.f32.mrf.mxu0
      %v840 = vadd.f32 %v739, %v839
      %841 = vmatmul.f32.gmra.mxu0 %v778
      %v842 = vpop.f32.mrf.mxu0
      %v843 = vadd.f32 %v740, %v842
      %844 = vmatmul.f32.gmra.mxu0 %v781
      %v845 = vpop.f32.mrf.mxu0
      %v846 = vadd.f32 %v741, %v845
      %847 = vmatmul.f32.gmra.mxu0 %v784
      %v848 = vpop.f32.mrf.mxu0
      %v849 = vadd.f32 %v742, %v848
      %850 = vmatmul.f32.gmra.mxu0 %v787
      %v851 = vpop.f32.mrf.mxu0
      %v852 = vadd.f32 %v743, %v851
      %853 = vmatmul.f32.gmra.mxu0 %v790
      %v854 = vpop.f32.mrf.mxu0
      %v855 = vadd.f32 %v744, %v854
      %856 = vmatmul.f32.gmra.mxu0 %v793
      %v857 = vpop.f32.mrf.mxu0
      %v858 = vadd.f32 %v745, %v857
      %859 = vdwg.mxu0
      %v860 = vperm.slane %v553, 0
      %v861 = vperm.slane %v568, 0
      %v862 = vmul.f32 %v436, %v860
      %v863 = vmul.f32 %v438, %v861
      %v864 = vmul.f32 %v440, %v860
      %v865 = vmul.f32 %v442, %v861
      %v866 = vmul.f32 %v444, %v860
      %v867 = vmul.f32 %v446, %v861
      %v868 = vmul.f32 %v448, %v860
      %v869 = vmul.f32 %v450, %v861
      %v870 = vmul.f32 %v452, %v860
      %v871 = vmul.f32 %v454, %v861
      %v872 = vmul.f32 %v456, %v860
      %v873 = vmul.f32 %v458, %v861
      %v874 = vmul.f32 %v460, %v860
      %v875 = vmul.f32 %v462, %v861
      %v876 = vmul.f32 %v464, %v860
      %v877 = vmul.f32 %v466, %v861
      %v878 = vmul.f32 %v468, %v860
      %v879 = vmul.f32 %v470, %v861
      %v880 = vmul.f32 %v472, %v860
      %v881 = vmul.f32 %v474, %v861
      %v882 = vmul.f32 %v476, %v860
      %v883 = vmul.f32 %v478, %v861
      %v884 = vmul.f32 %v480, %v860
      %v885 = vmul.f32 %v482, %v861
      %v886 = vmul.f32 %v484, %v860
      %v887 = vmul.f32 %v486, %v861
      %v888 = vmul.f32 %v488, %v860
      %v889 = vmul.f32 %v490, %v861
      %v890 = vmul.f32 %v492, %v860
      %v891 = vmul.f32 %v494, %v861
      %v892 = vmul.f32 %v496, %v860
      %v893 = vmul.f32 %v498, %v861
      %895 = vset.pattern.permute.xlu0 0
      %896 = vperm.xlu0 %895, %v813
      %v897 = vpop.permute.xlu0 %896
      %900 = vset.pattern.permute.xlu0 0
      %901 = vperm.xlu0 %900, %v816
      %v902 = vpop.permute.xlu0 %901
      %905 = vset.pattern.permute.xlu0 0
      %906 = vperm.xlu0 %905, %v819
      %v907 = vpop.permute.xlu0 %906
      %910 = vset.pattern.permute.xlu0 0
      %911 = vperm.xlu0 %910, %v822
      %v912 = vpop.permute.xlu0 %911
      %915 = vset.pattern.permute.xlu0 0
      %916 = vperm.xlu0 %915, %v825
      %v917 = vpop.permute.xlu0 %916
      %920 = vset.pattern.permute.xlu0 0
      %921 = vperm.xlu0 %920, %v828
      %v922 = vpop.permute.xlu0 %921
      %925 = vset.pattern.permute.xlu0 0
      %926 = vperm.xlu0 %925, %v831
      %v927 = vpop.permute.xlu0 %926
      %930 = vset.pattern.permute.xlu0 0
      %931 = vperm.xlu0 %930, %v834
      %v932 = vpop.permute.xlu0 %931
      %935 = vset.pattern.permute.xlu0 0
      %936 = vperm.xlu0 %935, %v837
      %v937 = vpop.permute.xlu0 %936
      %940 = vset.pattern.permute.xlu0 0
      %941 = vperm.xlu0 %940, %v840
      %v942 = vpop.permute.xlu0 %941
      %945 = vset.pattern.permute.xlu0 0
      %946 = vperm.xlu0 %945, %v843
      %v947 = vpop.permute.xlu0 %946
      %950 = vset.pattern.permute.xlu0 0
      %951 = vperm.xlu0 %950, %v846
      %v952 = vpop.permute.xlu0 %951
      %955 = vset.pattern.permute.xlu0 0
      %956 = vperm.xlu0 %955, %v849
      %v957 = vpop.permute.xlu0 %956
      %960 = vset.pattern.permute.xlu0 0
      %961 = vperm.xlu0 %960, %v852
      %v962 = vpop.permute.xlu0 %961
      %965 = vset.pattern.permute.xlu0 0
      %966 = vperm.xlu0 %965, %v855
      %v967 = vpop.permute.xlu0 %966
      %970 = vset.pattern.permute.xlu0 0
      %971 = vperm.xlu0 %970, %v858
      %v972 = vpop.permute.xlu0 %971
      %v974 = vadd.f32 %v862, %v897
      %v975 = vadd.f32 %v863, %v897
      %v976 = vadd.f32 %v864, %v902
      %v977 = vadd.f32 %v865, %v902
      %v978 = vadd.f32 %v866, %v907
      %v979 = vadd.f32 %v867, %v907
      %v980 = vadd.f32 %v868, %v912
      %v981 = vadd.f32 %v869, %v912
      %v982 = vadd.f32 %v870, %v917
      %v983 = vadd.f32 %v871, %v917
      %v984 = vadd.f32 %v872, %v922
      %v985 = vadd.f32 %v873, %v922
      %v986 = vadd.f32 %v874, %v927
      %v987 = vadd.f32 %v875, %v927
      %v988 = vadd.f32 %v876, %v932
      %v989 = vadd.f32 %v877, %v932
      %v990 = vadd.f32 %v878, %v937
      %v991 = vadd.f32 %v879, %v937
      %v992 = vadd.f32 %v880, %v942
      %v993 = vadd.f32 %v881, %v942
      %v994 = vadd.f32 %v882, %v947
      %v995 = vadd.f32 %v883, %v947
      %v996 = vadd.f32 %v884, %v952
      %v997 = vadd.f32 %v885, %v952
      %v998 = vadd.f32 %v886, %v957
      %v999 = vadd.f32 %v887, %v957
      %v1000 = vadd.f32 %v888, %v962
      %v1001 = vadd.f32 %v889, %v962
      %v1002 = vadd.f32 %v890, %v967
      %v1003 = vadd.f32 %v891, %v967
      %v1004 = vadd.f32 %v892, %v972
      %v1005 = vadd.f32 %v893, %v972
      %1006 = vst [vmem:[%s280] sm:$0xff] %v974
      %1007 = vst [vmem:[%s280 + $0x8] sm:$0xff] %v975
      %1008 = vst [vmem:[%s280 + $0x10] sm:$0xff] %v976
      %1009 = vst [vmem:[%s280 + $0x18] sm:$0xff] %v977
      %1010 = vst [vmem:[%s280 + $0x20] sm:$0xff] %v978
      %1011 = vst [vmem:[%s280 + $0x28] sm:$0xff] %v979
      %1012 = vst [vmem:[%s280 + $0x30] sm:$0xff] %v980
      %1013 = vst [vmem:[%s280 + $0x38] sm:$0xff] %v981
      %1014 = vst [vmem:[%s280 + $0x40] sm:$0xff] %v982
      %1015 = vst [vmem:[%s280 + $0x48] sm:$0xff] %v983
      %1016 = vst [vmem:[%s280 + $0x50] sm:$0xff] %v984
      %1017 = vst [vmem:[%s280 + $0x58] sm:$0xff] %v985
      %1018 = vst [vmem:[%s280 + $0x60] sm:$0xff] %v986
      %1019 = vst [vmem:[%s280 + $0x68] sm:$0xff] %v987
      %1020 = vst [vmem:[%s280 + $0x70] sm:$0xff] %v988
      %1021 = vst [vmem:[%s280 + $0x78] sm:$0xff] %v989
      %1022 = vst [vmem:[%s280 + $0x80] sm:$0xff] %v990
      %1023 = vst [vmem:[%s280 + $0x88] sm:$0xff] %v991
      %1024 = vst [vmem:[%s280 + $0x90] sm:$0xff] %v992
      %1025 = vst [vmem:[%s280 + $0x98] sm:$0xff] %v993
      %1026 = vst [vmem:[%s280 + $0xa0] sm:$0xff] %v994
      %1027 = vst [vmem:[%s280 + $0xa8] sm:$0xff] %v995
      %1028 = vst [vmem:[%s280 + $0xb0] sm:$0xff] %v996
      %1029 = vst [vmem:[%s280 + $0xb8] sm:$0xff] %v997
      %1030 = vst [vmem:[%s280 + $0xc0] sm:$0xff] %v998
      %1031 = vst [vmem:[%s280 + $0xc8] sm:$0xff] %v999
      %1032 = vst [vmem:[%s280 + $0xd0] sm:$0xff] %v1000
      %1033 = vst [vmem:[%s280 + $0xd8] sm:$0xff] %v1001
      %1034 = vst [vmem:[%s280 + $0xe0] sm:$0xff] %v1002
      %1035 = vst [vmem:[%s280 + $0xe8] sm:$0xff] %v1003
      %1036 = vst [vmem:[%s280 + $0xf0] sm:$0xff] %v1004
      %1037 = vst [vmem:[%s280 + $0xf8] sm:$0xff] %v1005
      %p1038 = scmp.lt.s32.totalorder %s20, 1
      %s1039 = scalar_select %p1038, %s20, 1
      %s1040 = smul.addr %s1039, 32
      %s1041 = smul.addr %s1040, 8
      %s1042 = scalar_lea.vmem %s7, %s1041
      // Predicated region
      $region49: #{gc_block_forward.1} parent=47 // pred_check
        %p1043 = pneg %p190
      $region50: #{gc_block_forward.1} parent=47 // pred_check_branch
        %1045 = sbr.rel (%p1043) target = $region52
      $region51: #{gc_block_forward.1} parent=47 // pred_region
        _
      $region52: #{gc_block_forward.1} parent=47 // pred_fallthru
        _
    $region48: #{gc_block_forward.1} parent=5 // pred_fallthru
      _
    %p1046 = scmp.le.s32.totalorder 2, %s15
    // Predicated region
    $region53: #{gc_block_forward.1} parent=5 // pred_check
      %p1047 = pneg %p1046
    $region54: #{gc_block_forward.1} parent=5 // pred_check_branch
      %1049 = sbr.rel (%p1047) target = $region56
    $region55: #{gc_block_forward.1} parent=5 // pred_region
      %s1050 = ssub.s32 %s15, 2
      // Predicated region
      $region57: #{gc_block_forward.1} parent=55 // pred_check
        %p1051 = pneg %p196
      $region58: #{gc_block_forward.1} parent=55 // pred_check_branch
        %1053 = sbr.rel (%p1051) target = $region60
      $region59: #{gc_block_forward.1} parent=55 // pred_region
        %p1054 = scmp.lt.s32.totalorder %s21, 1
        %s1055 = scalar_select %p1054, %s21, 1
        %s1056 = smul.addr %s1055, 32
        %s1057 = smul.addr %s1056, 8
        %s1058 = scalar_lea.vmem %s7, %s1057
      $region60: #{gc_block_forward.1} parent=55 // pred_fallthru
        _
    $region56: #{gc_block_forward.1} parent=5 // pred_fallthru
      _
  $region6: #{gc_block_forward.1} parent=0 // loop_footer
    %s19 = sadd.s32 1, %s15
  $region7: #{gc_block_forward.1} parent=0 // loop_footer_branch
    %14 = sbr.rel target = $region3
  $region8: #{gc_block_forward.1} parent=0 // loop_exit
    _

</llo_original>
